<compile_context>
chip_gen: v7x
topology: tpu7x:2x2x1
jax: 0.10.0
libtpu: 0.0.40
codegen_flags: <defaults>
</compile_context>

<pallas_src>
import functools

import jax
import jax.numpy as jnp
from jax.experimental import pallas as pl
from jax.experimental.pallas import tpu as pltpu


# ---------------------------------------------------------------------------
# Kernels
# ---------------------------------------------------------------------------

def _de_kernel_out_acc(x_ref, w_ref, b_ref, o_ref):
    """f32 output: accumulate directly into the resident output block."""
    k = pl.program_id(2)

    @pl.when(k == 0)
    def _():
        o_ref[...] = jnp.broadcast_to(b_ref[...].astype(o_ref.dtype), o_ref.shape)

    o_ref[...] += jnp.dot(x_ref[...], w_ref[...], preferred_element_type=jnp.float32)


def _de_kernel_scratch(x_ref, w_ref, b_ref, o_ref, acc_ref):
    """Generic output dtype: accumulate in f32 scratch, cast on the last K step."""
    k = pl.program_id(2)

    @pl.when(k == 0)
    def _():
        acc_ref[...] = jnp.broadcast_to(b_ref[...].astype(jnp.float32), acc_ref.shape)

    acc_ref[...] += jnp.dot(x_ref[...], w_ref[...], preferred_element_type=jnp.float32)

    @pl.when(k == pl.num_programs(2) - 1)
    def _():
        o_ref[...] = acc_ref[...].astype(o_ref.dtype)


# ---------------------------------------------------------------------------
# Tiling helpers (shared by the one-time param prep and the per-call forward)
# ---------------------------------------------------------------------------

def _round_up(x, m):
    return ((x + m - 1) // m) * m


def _k_tiling(K):
    """Return (tk, K_pad)."""
    if K <= 2048:
        tk = _round_up(K, 256)          # single K step: no per-step overhead
        return tk, tk
    tk = 1024                           # large K: wide steps amortize ~0.35us/step
    return tk, _round_up(K, tk)


def _n_padding(N):
    """N < 128: full-extent last-dim blocks, no padding (4x less weight traffic)."""
    return N if N < 128 else _round_up(N, 128)


# ---------------------------------------------------------------------------
# One-time parameter preparation (hoisted out of the per-call path)
# ---------------------------------------------------------------------------

def prepare_de_params(w, b, compute_dtype=jnp.float32):
    """Pack the Linear params into kernel layout once at init.

    w: [K, N] (transposed PyTorch weight so that y = x @ w + b), b: [N].
    Returns (w_p [K_pad, N_pad] in compute_dtype, b_p [1, N_pad] f32).
    """
    K, N = w.shape
    _, K_pad = _k_tiling(K)
    N_pad = _n_padding(N)
    w_p = jnp.pad(w, ((0, K_pad - K), (0, N_pad - N))).astype(compute_dtype)
    b_p = jnp.pad(b.astype(jnp.float32), (0, N_pad - N)).reshape(1, N_pad)
    return jax.device_put(w_p), jax.device_put(b_p)


# ---------------------------------------------------------------------------
# Forward
# ---------------------------------------------------------------------------

@functools.partial(jax.jit, static_argnames=("n_out", "compute_dtype"))
def de_forward(x, w_p, b_p, *, n_out, compute_dtype=jnp.float32):
    """x: [B, C, H, W]; w_p/b_p from prepare_de_params.  Returns [B, n_out]."""
    B = x.shape[0]
    x_flat = x.reshape(B, -1)                       # glue: torch .view(B, -1)
    K = x_flat.shape[1]
    tk, K_pad = _k_tiling(K)
    K_pad_w, N_pad = w_p.shape
    assert K_pad_w == K_pad, "w_p was not prepared with prepare_de_params for this K"

    out_dtype = x.dtype
    compute_dtype = jnp.dtype(compute_dtype)
    c_bytes = compute_dtype.itemsize
    o_bytes = jnp.dtype(out_dtype).itemsize

    # ---- M tile: sublane-aligned (16 for packed bf16); up to 512 for big B so
    # the weight is re-streamed from HBM fewer times. --------------------------
    sub = 16 if compute_dtype == jnp.bfloat16 else 8
    tm = min(512, _round_up(B, sub))
    M_pad = _round_up(B, tm)
    n_m_blocks = M_pad // tm

    # ---- N tile --------------------------------------------------------------
    if N_pad < 128:
        tn = N_pad                                  # full-extent (unpadded) N
    elif N_pad % 256 == 0 and not (n_m_blocks == 1 and N_pad >= 256):
        tn = 256                                    # native v6e/v7x MXU width
    else:
        tn = 128                                    # >=2 j-blocks for 2-TC v7x / v5e
    n_n_blocks = N_pad // tn
    n_k_blocks = K_pad // tk

    # ---- activations: cast first (half the pad-copy bytes on bf16), then pad --
    x_p = jnp.pad(x_flat.astype(compute_dtype), ((0, M_pad - B), (0, K_pad - K)))

    # ---- BlockSpecs ------------------------------------------------------------
    x_spec = pl.BlockSpec((tm, tk), lambda i, j, k: (i, k))
    w_index = lambda i, j, k: (k, j)
    deep_w = (n_k_blocks >= 3 and tm <= 64)         # weight-streaming regime
    if deep_w:
        try:
            w_spec = pl.BlockSpec((tk, tn), w_index, pipeline_mode=pl.Buffered(3))
        except TypeError:                           # older jax without pipeline_mode
            w_spec = pl.BlockSpec((tk, tn), w_index)
    else:
        w_spec = pl.BlockSpec((tk, tn), w_index)
    b_spec = pl.BlockSpec((1, tn), lambda i, j, k: (0, j))
    o_spec = pl.BlockSpec((tm, tn), lambda i, j, k: (i, j))

    # ---- kernel variant --------------------------------------------------------
    use_scratch = jnp.dtype(out_dtype) != jnp.float32
    if use_scratch:
        kernel = _de_kernel_scratch
        scratch_shapes = [pltpu.VMEM((tm, tn), jnp.float32)]
    else:
        kernel = _de_kernel_out_acc
        scratch_shapes = []

    # ---- VMEM budget / cost estimate -------------------------------------------
    nbuf_w = 3 if deep_w else 2
    vmem_needed = (
        2 * tm * tk * c_bytes                      # double-buffered x tiles
        + nbuf_w * tk * tn * c_bytes               # w tiles
        + 2 * tm * tn * o_bytes                    # output tiles
        + 2 * tn * 4                               # bias
        + (tm * tn * 4 if use_scratch else 0)      # f32 accumulator
    )
    vmem_limit = int(min(max(2 * vmem_needed, 8 * 1024 * 1024), 48 * 1024 * 1024))

    bytes_accessed = (
        M_pad * K_pad * c_bytes * n_n_blocks       # x re-read once per j block
        + K_pad * N_pad * c_bytes * n_m_blocks     # w re-read once per i block
        + N_pad * 4 * n_m_blocks * n_n_blocks      # bias
        + M_pad * N_pad * o_bytes                  # output
    )

    y_pad = pl.pallas_call(
        kernel,
        out_shape=jax.ShapeDtypeStruct((M_pad, N_pad), out_dtype),
        grid_spec=pltpu.PrefetchScalarGridSpec(
            num_scalar_prefetch=0,
            grid=(n_m_blocks, n_n_blocks, n_k_blocks),
            in_specs=[x_spec, w_spec, b_spec],
            out_specs=o_spec,
            scratch_shapes=scratch_shapes,
        ),
        compiler_params=pltpu.CompilerParams(
            dimension_semantics=("parallel", "parallel", "arbitrary"),
            vmem_limit_bytes=vmem_limit,
        ),
        cost_estimate=pl.CostEstimate(
            flops=2 * M_pad * K_pad * N_pad,
            transcendentals=0,
            bytes_accessed=bytes_accessed,
        ),
    )(x_p, w_p, b_p)

    return y_pad[:B, :n_out]


def de_reference(x, w, b):
    """Pure-JAX reference of the PyTorch forward pass."""
    return x.reshape(x.shape[0], -1) @ w + b


if __name__ == "__main__":
    # Small shapes consistent with the module: x is [B, C, H, W],
    # input_dim = C*H*W = 1024, output_dim = 32.
    B, C, H, W = 2, 4, 16, 16
    input_dim = C * H * W
    output_dim = 32

    key = jax.random.PRNGKey(0)
    kx, kw, kb = jax.random.split(key, 3)

    x = jax.random.normal(kx, (B, C, H, W), dtype=jnp.float32)

    # Deterministic "Fixed" (train=False) parameters, mimicking nn.Linear's
    # uniform(-1/sqrt(in), 1/sqrt(in)) init.  Stored as [K, N] (transposed).
    bound = 1.0 / jnp.sqrt(jnp.float32(input_dim))
    w = jax.random.uniform(
        kw, (input_dim, output_dim), dtype=jnp.float32, minval=-bound, maxval=bound
    )
    b = jax.random.uniform(
        kb, (output_dim,), dtype=jnp.float32, minval=-bound, maxval=bound
    )

    y_ref = de_reference(x, w, b)

    # --- exact f32 path (matches the PyTorch module) -------------------------
    w32, b32 = prepare_de_params(w, b, compute_dtype=jnp.float32)
    y = de_forward(x, w32, b32, n_out=output_dim, compute_dtype=jnp.float32)
    y = jax.block_until_ready(y)
    assert y.shape == (B, output_dim)
    assert jnp.allclose(y, y_ref, atol=1e-5, rtol=1e-5), "f32 mismatch vs reference"

    # --- bf16-weight path (halves weight HBM traffic; f32 accumulation) ------
    wbf, bbf = prepare_de_params(w, b, compute_dtype=jnp.bfloat16)
    y_bf = de_forward(x, wbf, bbf, n_out=output_dim, compute_dtype=jnp.bfloat16)
    y_bf = jax.block_until_ready(y_bf)
    assert jnp.allclose(y_bf, y_ref, atol=5e-2, rtol=5e-2), "bf16 mismatch vs reference"

    # --- bf16 input/output path (exercises the scratch-accumulator kernel) ---
    y_bf16_out = de_forward(
        x.astype(jnp.bfloat16), wbf, bbf, n_out=output_dim, compute_dtype=jnp.bfloat16
    )
    y_bf16_out = jax.block_until_ready(y_bf16_out)
    assert jnp.allclose(
        y_bf16_out.astype(jnp.float32), y_ref, atol=1e-1, rtol=1e-1
    ), "bf16-out mismatch vs reference"

    print("KERNEL_OK")
</pallas_src>

<mosaic_0001>
module attributes {stable_mosaic.version = 11 : i64} {
  func.func @_de_kernel_out_acc(%arg0: i32, %arg1: i32, %arg2: i32, %arg3: memref<8x1024xf32, #tpu.memory_space<vmem>>, %arg4: memref<1024x32xf32, #tpu.memory_space<vmem>>, %arg5: memref<1x32xf32, #tpu.memory_space<vmem>>, %arg6: memref<8x32xf32, #tpu.memory_space<vmem>>) attributes {dimension_semantics = [#tpu.dimension_semantics<parallel>, #tpu.dimension_semantics<parallel>, #tpu.dimension_semantics<arbitrary>], iteration_bounds = array<i64: 1, 1, 1>, scalar_prefetch = 0 : i64, scratch_operands = 0 : i64, tpu.core_type = #tpu.core_type<tc>, window_params = [{transform_indices = @transform_0, window_bounds = array<i64: 8, 1024>}, {transform_indices = @transform_1, window_bounds = array<i64: 1024, 32>}, {transform_indices = @transform_2, window_bounds = array<i64: 1, 32>}, {transform_indices = @transform_3, window_bounds = array<i64: 8, 32>}]} {
    %c0_i32 = arith.constant 0 : i32
    %0 = arith.cmpi eq, %arg2, %c0_i32 : i32
    %1 = arith.extui %0 : i1 to i32
    %c0_i32_0 = arith.constant 0 : i32
    %2 = arith.cmpi ne, %1, %c0_i32_0 : i32
    scf.if %2 {
      %c0_8 = arith.constant 0 : index
      %c0_9 = arith.constant 0 : index
      %9 = vector.load %arg5[%c0_8, %c0_9] : memref<1x32xf32, #tpu.memory_space<vmem>>, vector<1x32xf32>
      %10 = vector.shape_cast %9 : vector<1x32xf32> to vector<1x32xf32>
      %11 = vector.broadcast %10 : vector<1x32xf32> to vector<8x32xf32>
      %c0_10 = arith.constant 0 : index
      %c0_11 = arith.constant 0 : index
      %12 = vector.load %arg6[%c0_10, %c0_11] : memref<8x32xf32, #tpu.memory_space<vmem>>, vector<8x32xf32>
      tpu.vector_store %arg6[%c0_10, %c0_11], %11 {strides = array<i32>} : memref<8x32xf32, #tpu.memory_space<vmem>>, vector<8x32xf32>,
    } else {
    }
    %c0 = arith.constant 0 : index
    %c0_1 = arith.constant 0 : index
    %3 = vector.load %arg6[%c0, %c0_1] : memref<8x32xf32, #tpu.memory_space<vmem>>, vector<8x32xf32>
    %c0_2 = arith.constant 0 : index
    %c0_3 = arith.constant 0 : index
    %4 = vector.load %arg3[%c0_2, %c0_3] : memref<8x1024xf32, #tpu.memory_space<vmem>>, vector<8x1024xf32>
    %c0_4 = arith.constant 0 : index
    %c0_5 = arith.constant 0 : index
    %5 = vector.load %arg4[%c0_4, %c0_5] : memref<1024x32xf32, #tpu.memory_space<vmem>>, vector<1024x32xf32>
    %cst = arith.constant dense<0.000000e+00> : vector<8x32xf32>
    %6 = tpu.matmul %4, %5, %cst {dimension_numbers = #tpu.dot_dimension_numbers<[1], [0], [0], [1], [0, 0, 1, 1], [], []>} : vector<8x1024xf32>, vector<1024x32xf32>, vector<8x32xf32> -> vector<8x32xf32>
    %7 = arith.addf %3, %6 : vector<8x32xf32>
    %c0_6 = arith.constant 0 : index
    %c0_7 = arith.constant 0 : index
    %8 = vector.load %arg6[%c0_6, %c0_7] : memref<8x32xf32, #tpu.memory_space<vmem>>, vector<8x32xf32>
    tpu.vector_store %arg6[%c0_6, %c0_7], %7 {strides = array<i32>} : memref<8x32xf32, #tpu.memory_space<vmem>>, vector<8x32xf32>,
    return
  }
  func.func @transform_0(%arg0: i32, %arg1: i32, %arg2: i32) -> (i32, i32) {
    %c0_i32 = arith.constant 0 : i32
    return %arg0, %arg2 : i32, i32
  }
  func.func @transform_1(%arg0: i32, %arg1: i32, %arg2: i32) -> (i32, i32) {
    %c0_i32 = arith.constant 0 : i32
    return %arg2, %arg1 : i32, i32
  }
  func.func @transform_2(%arg0: i32, %arg1: i32, %arg2: i32) -> (i32, i32) {
    %c0_i32 = arith.constant 0 : i32
    %c0_i32_0 = arith.constant 0 : i32
    return %c0_i32, %arg1 : i32, i32
  }
  func.func @transform_3(%arg0: i32, %arg1: i32, %arg2: i32) -> (i32, i32) {
    %c0_i32 = arith.constant 0 : i32
    return %arg0, %arg1 : i32, i32
  }
}

</mosaic_0001>

<llo_original>
// kernel: de_forward.1
$region0: #{de_forward.1}
  #allocation0 [shape = 'u32[]', space=smem, size = 0x4, offset = 0x4, fixed_abs, tag = 'smem constant byte address 0x4 - core index']
  #allocation1 [shape = 'u32[144,128]{1,0:T(1,128)}', space=vmem, size = 0x12000, scoped, tag = 'internal scratch']
  %s0 = inlined_call_operand.vmem [shape: f32[8,1024], index: 0, kind: input, shape index: {}]
  %s1 = inlined_call_operand.vmem [shape: f32[1024,32], index: 1, kind: input, shape index: {}]
  %s2 = inlined_call_operand.vmem [shape: f32[1,32], index: 2, kind: input, shape index: {}]
  %s3 = inlined_call_operand.vmem [shape: f32[8,32], index: 3, kind: output, shape index: {}]
  %s4 = sld [smem:[#allocation0]]
  $region26: #{de_forward.1} parent=0
    _
  %s6 = ssub.s32 1, %s4
  %s7 = scalar_select 0, %s6, %s4
  // Predicated region
  $region2: #{de_forward.1} parent=0 // pred_check
    _
  $region3: #{de_forward.1} parent=0 // pred_check_branch
    %9 = sbr.rel (0) target = $region5
  $region4: #{de_forward.1} parent=0 // pred_region
    _
  $region5: #{de_forward.1} parent=0 // pred_fallthru
    _
  // Predicated region
  $region6: #{de_forward.1} parent=0 // pred_check
    _
  $region7: #{de_forward.1} parent=0 // pred_check_branch
    %11 = sbr.rel (0) target = $region9
  $region8: #{de_forward.1} parent=0 // pred_region
    _
  $region9: #{de_forward.1} parent=0 // pred_fallthru
    _
  // Predicated region
  $region10: #{de_forward.1} parent=0 // pred_check
    _
  $region11: #{de_forward.1} parent=0 // pred_check_branch
    %13 = sbr.rel (0) target = $region13
  $region12: #{de_forward.1} parent=0 // pred_region
    _
  $region13: #{de_forward.1} parent=0 // pred_fallthru
    _
  %p14 = scmp.eq.s32.totalorder 0, 0
  // Predicated region
  $region14: #{de_forward.1} parent=0 // pred_check
    %p15 = pneg %p14
  $region15: #{de_forward.1} parent=0 // pred_check_branch
    %17 = sbr.rel (%p15) target = $region17
  $region16: #{de_forward.1} parent=0 // pred_region
    %v18 = vld [vmem:[%s2] sm:$0x1]
    %v20 = vlaneseq
    %v21 = vshrl.u32 %v20, 7
    %v22 = vsub.s32 0, %v21
    %v23 = vrot.slane %v18, %v22
    %vm25 = vcmask 261120
    %26 = vst.msk [vmem:[%s3] sm:$0xff] %vm25, %v23
  $region17: #{de_forward.1} parent=0 // pred_fallthru
    _
  %v27 = vld [vmem:[%s3] sm:$0xff]
  %v28 = vld [vmem:[%s0] sm:$0xff]
  %v29 = vld [vmem:[%s0 + $0x8] sm:$0xff]
  %v30 = vld [vmem:[%s0 + $0x10] sm:$0xff]
  %v31 = vld [vmem:[%s0 + $0x18] sm:$0xff]
  %v32 = vld [vmem:[%s0 + $0x20] sm:$0xff]
  %v33 = vld [vmem:[%s0 + $0x28] sm:$0xff]
  %v34 = vld [vmem:[%s0 + $0x30] sm:$0xff]
  %v35 = vld [vmem:[%s0 + $0x38] sm:$0xff]
  %v36 = vld [vmem:[%s1] sm:$0xff]
  %v37 = vld [vmem:[%s1 + $0x8] sm:$0xff]
  %v38 = vld [vmem:[%s1 + $0x10] sm:$0xff]
  %v39 = vld [vmem:[%s1 + $0x18] sm:$0xff]
  %v40 = vld [vmem:[%s1 + $0x20] sm:$0xff]
  %v41 = vld [vmem:[%s1 + $0x28] sm:$0xff]
  %v42 = vld [vmem:[%s1 + $0x30] sm:$0xff]
  %v43 = vld [vmem:[%s1 + $0x38] sm:$0xff]
  %v44 = vld [vmem:[%s1 + $0x40] sm:$0xff]
  %v45 = vld [vmem:[%s1 + $0x48] sm:$0xff]
  %v46 = vld [vmem:[%s1 + $0x50] sm:$0xff]
  %v47 = vld [vmem:[%s1 + $0x58] sm:$0xff]
  %v48 = vld [vmem:[%s1 + $0x60] sm:$0xff]
  %v49 = vld [vmem:[%s1 + $0x68] sm:$0xff]
  %v50 = vld [vmem:[%s1 + $0x70] sm:$0xff]
  %v51 = vld [vmem:[%s1 + $0x78] sm:$0xff]
  %v52 = vld [vmem:[%s1 + $0x80] sm:$0xff]
  %v53 = vld [vmem:[%s1 + $0x88] sm:$0xff]
  %v54 = vld [vmem:[%s1 + $0x90] sm:$0xff]
  %v55 = vld [vmem:[%s1 + $0x98] sm:$0xff]
  %v56 = vld [vmem:[%s1 + $0xa0] sm:$0xff]
  %v57 = vld [vmem:[%s1 + $0xa8] sm:$0xff]
  %v58 = vld [vmem:[%s1 + $0xb0] sm:$0xff]
  %v59 = vld [vmem:[%s1 + $0xb8] sm:$0xff]
  %v60 = vld [vmem:[%s1 + $0xc0] sm:$0xff]
  %v61 = vld [vmem:[%s1 + $0xc8] sm:$0xff]
  %v62 = vld [vmem:[%s1 + $0xd0] sm:$0xff]
  %v63 = vld [vmem:[%s1 + $0xd8] sm:$0xff]
  %v64 = vld [vmem:[%s1 + $0xe0] sm:$0xff]
  %v65 = vld [vmem:[%s1 + $0xe8] sm:$0xff]
  %v66 = vld [vmem:[%s1 + $0xf0] sm:$0xff]
  %v67 = vld [vmem:[%s1 + $0xf8] sm:$0xff]
  %v68 = vld [vmem:[%s1 + $0x100] sm:$0xff]
  %v69 = vld [vmem:[%s1 + $0x108] sm:$0xff]
  %v70 = vld [vmem:[%s1 + $0x110] sm:$0xff]
  %v71 = vld [vmem:[%s1 + $0x118] sm:$0xff]
  %v72 = vld [vmem:[%s1 + $0x120] sm:$0xff]
  %v73 = vld [vmem:[%s1 + $0x128] sm:$0xff]
  %v74 = vld [vmem:[%s1 + $0x130] sm:$0xff]
  %v75 = vld [vmem:[%s1 + $0x138] sm:$0xff]
  %v76 = vld [vmem:[%s1 + $0x140] sm:$0xff]
  %v77 = vld [vmem:[%s1 + $0x148] sm:$0xff]
  %v78 = vld [vmem:[%s1 + $0x150] sm:$0xff]
  %v79 = vld [vmem:[%s1 + $0x158] sm:$0xff]
  %v80 = vld [vmem:[%s1 + $0x160] sm:$0xff]
  %v81 = vld [vmem:[%s1 + $0x168] sm:$0xff]
  %v82 = vld [vmem:[%s1 + $0x170] sm:$0xff]
  %v83 = vld [vmem:[%s1 + $0x178] sm:$0xff]
  %v84 = vld [vmem:[%s1 + $0x180] sm:$0xff]
  %v85 = vld [vmem:[%s1 + $0x188] sm:$0xff]
  %v86 = vld [vmem:[%s1 + $0x190] sm:$0xff]
  %v87 = vld [vmem:[%s1 + $0x198] sm:$0xff]
  %v88 = vld [vmem:[%s1 + $0x1a0] sm:$0xff]
  %v89 = vld [vmem:[%s1 + $0x1a8] sm:$0xff]
  %v90 = vld [vmem:[%s1 + $0x1b0] sm:$0xff]
  %v91 = vld [vmem:[%s1 + $0x1b8] sm:$0xff]
  %v92 = vld [vmem:[%s1 + $0x1c0] sm:$0xff]
  %v93 = vld [vmem:[%s1 + $0x1c8] sm:$0xff]
  %v94 = vld [vmem:[%s1 + $0x1d0] sm:$0xff]
  %v95 = vld [vmem:[%s1 + $0x1d8] sm:$0xff]
  %v96 = vld [vmem:[%s1 + $0x1e0] sm:$0xff]
  %v97 = vld [vmem:[%s1 + $0x1e8] sm:$0xff]
  %v98 = vld [vmem:[%s1 + $0x1f0] sm:$0xff]
  %v99 = vld [vmem:[%s1 + $0x1f8] sm:$0xff]
  %v100 = vld [vmem:[%s1 + $0x200] sm:$0xff]
  %v101 = vld [vmem:[%s1 + $0x208] sm:$0xff]
  %v102 = vld [vmem:[%s1 + $0x210] sm:$0xff]
  %v103 = vld [vmem:[%s1 + $0x218] sm:$0xff]
  %v104 = vld [vmem:[%s1 + $0x220] sm:$0xff]
  %v105 = vld [vmem:[%s1 + $0x228] sm:$0xff]
  %v106 = vld [vmem:[%s1 + $0x230] sm:$0xff]
  %v107 = vld [vmem:[%s1 + $0x238] sm:$0xff]
  %v108 = vld [vmem:[%s1 + $0x240] sm:$0xff]
  %v109 = vld [vmem:[%s1 + $0x248] sm:$0xff]
  %v110 = vld [vmem:[%s1 + $0x250] sm:$0xff]
  %v111 = vld [vmem:[%s1 + $0x258] sm:$0xff]
  %v112 = vld [vmem:[%s1 + $0x260] sm:$0xff]
  %v113 = vld [vmem:[%s1 + $0x268] sm:$0xff]
  %v114 = vld [vmem:[%s1 + $0x270] sm:$0xff]
  %v115 = vld [vmem:[%s1 + $0x278] sm:$0xff]
  %v116 = vld [vmem:[%s1 + $0x280] sm:$0xff]
  %v117 = vld [vmem:[%s1 + $0x288] sm:$0xff]
  %v118 = vld [vmem:[%s1 + $0x290] sm:$0xff]
  %v119 = vld [vmem:[%s1 + $0x298] sm:$0xff]
  %v120 = vld [vmem:[%s1 + $0x2a0] sm:$0xff]
  %v121 = vld [vmem:[%s1 + $0x2a8] sm:$0xff]
  %v122 = vld [vmem:[%s1 + $0x2b0] sm:$0xff]
  %v123 = vld [vmem:[%s1 + $0x2b8] sm:$0xff]
  %v124 = vld [vmem:[%s1 + $0x2c0] sm:$0xff]
  %v125 = vld [vmem:[%s1 + $0x2c8] sm:$0xff]
  %v126 = vld [vmem:[%s1 + $0x2d0] sm:$0xff]
  %v127 = vld [vmem:[%s1 + $0x2d8] sm:$0xff]
  %v128 = vld [vmem:[%s1 + $0x2e0] sm:$0xff]
  %v129 = vld [vmem:[%s1 + $0x2e8] sm:$0xff]
  %v130 = vld [vmem:[%s1 + $0x2f0] sm:$0xff]
  %v131 = vld [vmem:[%s1 + $0x2f8] sm:$0xff]
  %v132 = vld [vmem:[%s1 + $0x300] sm:$0xff]
  %v133 = vld [vmem:[%s1 + $0x308] sm:$0xff]
  %v134 = vld [vmem:[%s1 + $0x310] sm:$0xff]
  %v135 = vld [vmem:[%s1 + $0x318] sm:$0xff]
  %v136 = vld [vmem:[%s1 + $0x320] sm:$0xff]
  %v137 = vld [vmem:[%s1 + $0x328] sm:$0xff]
  %v138 = vld [vmem:[%s1 + $0x330] sm:$0xff]
  %v139 = vld [vmem:[%s1 + $0x338] sm:$0xff]
  %v140 = vld [vmem:[%s1 + $0x340] sm:$0xff]
  %v141 = vld [vmem:[%s1 + $0x348] sm:$0xff]
  %v142 = vld [vmem:[%s1 + $0x350] sm:$0xff]
  %v143 = vld [vmem:[%s1 + $0x358] sm:$0xff]
  %v144 = vld [vmem:[%s1 + $0x360] sm:$0xff]
  %v145 = vld [vmem:[%s1 + $0x368] sm:$0xff]
  %v146 = vld [vmem:[%s1 + $0x370] sm:$0xff]
  %v147 = vld [vmem:[%s1 + $0x378] sm:$0xff]
  %v148 = vld [vmem:[%s1 + $0x380] sm:$0xff]
  %v149 = vld [vmem:[%s1 + $0x388] sm:$0xff]
  %v150 = vld [vmem:[%s1 + $0x390] sm:$0xff]
  %v151 = vld [vmem:[%s1 + $0x398] sm:$0xff]
  %v152 = vld [vmem:[%s1 + $0x3a0] sm:$0xff]
  %v153 = vld [vmem:[%s1 + $0x3a8] sm:$0xff]
  %v154 = vld [vmem:[%s1 + $0x3b0] sm:$0xff]
  %v155 = vld [vmem:[%s1 + $0x3b8] sm:$0xff]
  %v156 = vld [vmem:[%s1 + $0x3c0] sm:$0xff]
  %v157 = vld [vmem:[%s1 + $0x3c8] sm:$0xff]
  %v158 = vld [vmem:[%s1 + $0x3d0] sm:$0xff]
  %v159 = vld [vmem:[%s1 + $0x3d8] sm:$0xff]
  %v160 = vld [vmem:[%s1 + $0x3e0] sm:$0xff]
  %v161 = vld [vmem:[%s1 + $0x3e8] sm:$0xff]
  %v162 = vld [vmem:[%s1 + $0x3f0] sm:$0xff]
  %v163 = vld [vmem:[%s1 + $0x3f8] sm:$0xff]
  %164 = vmatprep.subr.mxu0 0.0
  %165 = vmatpush1.msra.mxu0 %v36
  %166 = vmatprep.subr.mxu0 0.0
  %167 = vmatpush1.msra.mxu0 %v37
  %168 = vmatprep.subr.mxu0 0.0
  %169 = vmatpush1.msra.mxu0 %v38
  %170 = vmatprep.subr.mxu0 0.0
  %171 = vmatpush1.msra.mxu0 %v39
  %172 = vmatprep.subr.mxu0 0.0
  %173 = vmatpush1.msra.mxu0 %v40
  %174 = vmatprep.subr.mxu0 0.0
  %175 = vmatpush1.msra.mxu0 %v41
  %176 = vmatprep.subr.mxu0 0.0
  %177 = vmatpush1.msra.mxu0 %v42
  %178 = vmatprep.subr.mxu0 0.0
  %179 = vmatpush1.msra.mxu0 %v43
  %180 = vmatprep.subr.mxu0 0.0
  %181 = vmatpush1.msra.mxu0 %v44
  %182 = vmatprep.subr.mxu0 0.0
  %183 = vmatpush1.msra.mxu0 %v45
  %184 = vmatprep.subr.mxu0 0.0
  %185 = vmatpush1.msra.mxu0 %v46
  %186 = vmatprep.subr.mxu0 0.0
  %187 = vmatpush1.msra.mxu0 %v47
  %188 = vmatprep.subr.mxu0 0.0
  %189 = vmatpush1.msra.mxu0 %v48
  %190 = vmatprep.subr.mxu0 0.0
  %191 = vmatpush1.msra.mxu0 %v49
  %192 = vmatprep.subr.mxu0 0.0
  %193 = vmatpush1.msra.mxu0 %v50
  %194 = vmatprep.subr.mxu0 0.0
  %195 = vmatpush1.msra.mxu0 %v51
  %196 = vmatprep.subr.mxu0 0.0
  %197 = vmatpush1.msra.mxu0 %v52
  %198 = vmatprep.subr.mxu0 0.0
  %199 = vmatpush1.msra.mxu0 %v53
  %200 = vmatprep.subr.mxu0 0.0
  %201 = vmatpush1.msra.mxu0 %v54
  %202 = vmatprep.subr.mxu0 0.0
  %203 = vmatpush1.msra.mxu0 %v55
  %204 = vmatprep.subr.mxu0 0.0
  %205 = vmatpush1.msra.mxu0 %v56
  %206 = vmatprep.subr.mxu0 0.0
  %207 = vmatpush1.msra.mxu0 %v57
  %208 = vmatprep.subr.mxu0 0.0
  %209 = vmatpush1.msra.mxu0 %v58
  %210 = vmatprep.subr.mxu0 0.0
  %211 = vmatpush1.msra.mxu0 %v59
  %212 = vmatprep.subr.mxu0 0.0
  %213 = vmatpush1.msra.mxu0 %v60
  %214 = vmatprep.subr.mxu0 0.0
  %215 = vmatpush1.msra.mxu0 %v61
  %216 = vmatprep.subr.mxu0 0.0
  %217 = vmatpush1.msra.mxu0 %v62
  %218 = vmatprep.subr.mxu0 0.0
  %219 = vmatpush1.msra.mxu0 %v63
  %220 = vmatprep.subr.mxu0 0.0
  %221 = vmatpush1.msra.mxu0 %v64
  %222 = vmatprep.subr.mxu0 0.0
  %223 = vmatpush1.msra.mxu0 %v65
  %224 = vmatprep.subr.mxu0 0.0
  %225 = vmatpush1.msra.mxu0 %v66
  %226 = vmatprep.subr.mxu0 0.0
  %227 = vmatpush1.msra.mxu0 %v67
  %228 = vmatprep.mubr.f32.mxu0 %v29
  %229 = vmatmul.mubr.f32.gmra.mrb[0].mxu0 %v28
  %v230 = vpop.f32.mrb[0].mxu0
  %v231 = vadd.f32 0.0, %v230
  %v232 = vpop.f32.mrb[0].mxu0
  %233 = vdwg.mxu0
  %234 = vmatprep.subr.mxu0 0.0
  %235 = vmatpush1.msra.mxu0 %v68
  %236 = vmatprep.subr.mxu0 0.0
  %237 = vmatpush1.msra.mxu0 %v69
  %238 = vmatprep.subr.mxu0 0.0
  %239 = vmatpush1.msra.mxu0 %v70
  %240 = vmatprep.subr.mxu0 0.0
  %241 = vmatpush1.msra.mxu0 %v71
  %242 = vmatprep.subr.mxu0 0.0
  %243 = vmatpush1.msra.mxu0 %v72
  %244 = vmatprep.subr.mxu0 0.0
  %245 = vmatpush1.msra.mxu0 %v73
  %246 = vmatprep.subr.mxu0 0.0
  %247 = vmatpush1.msra.mxu0 %v74
  %248 = vmatprep.subr.mxu0 0.0
  %249 = vmatpush1.msra.mxu0 %v75
  %250 = vmatprep.subr.mxu0 0.0
  %251 = vmatpush1.msra.mxu0 %v76
  %252 = vmatprep.subr.mxu0 0.0
  %253 = vmatpush1.msra.mxu0 %v77
  %254 = vmatprep.subr.mxu0 0.0
  %255 = vmatpush1.msra.mxu0 %v78
  %256 = vmatprep.subr.mxu0 0.0
  %257 = vmatpush1.msra.mxu0 %v79
  %258 = vmatprep.subr.mxu0 0.0
  %259 = vmatpush1.msra.mxu0 %v80
  %260 = vmatprep.subr.mxu0 0.0
  %261 = vmatpush1.msra.mxu0 %v81
  %262 = vmatprep.subr.mxu0 0.0
  %263 = vmatpush1.msra.mxu0 %v82
  %264 = vmatprep.subr.mxu0 0.0
  %265 = vmatpush1.msra.mxu0 %v83
  %266 = vmatprep.subr.mxu0 0.0
  %267 = vmatpush1.msra.mxu0 %v84
  %268 = vmatprep.subr.mxu0 0.0
  %269 = vmatpush1.msra.mxu0 %v85
  %270 = vmatprep.subr.mxu0 0.0
  %271 = vmatpush1.msra.mxu0 %v86
  %272 = vmatprep.subr.mxu0 0.0
  %273 = vmatpush1.msra.mxu0 %v87
  %274 = vmatprep.subr.mxu0 0.0
  %275 = vmatpush1.msra.mxu0 %v88
  %276 = vmatprep.subr.mxu0 0.0
  %277 = vmatpush1.msra.mxu0 %v89
  %278 = vmatprep.subr.mxu0 0.0
  %279 = vmatpush1.msra.mxu0 %v90
  %280 = vmatprep.subr.mxu0 0.0
  %281 = vmatpush1.msra.mxu0 %v91
  %282 = vmatprep.subr.mxu0 0.0
  %283 = vmatpush1.msra.mxu0 %v92
  %284 = vmatprep.subr.mxu0 0.0
  %285 = vmatpush1.msra.mxu0 %v93
  %286 = vmatprep.subr.mxu0 0.0
  %287 = vmatpush1.msra.mxu0 %v94
  %288 = vmatprep.subr.mxu0 0.0
  %289 = vmatpush1.msra.mxu0 %v95
  %290 = vmatprep.subr.mxu0 0.0
  %291 = vmatpush1.msra.mxu0 %v96
  %292 = vmatprep.subr.mxu0 0.0
  %293 = vmatpush1.msra.mxu0 %v97
  %294 = vmatprep.subr.mxu0 0.0
  %295 = vmatpush1.msra.mxu0 %v98
  %296 = vmatprep.subr.mxu0 0.0
  %297 = vmatpush1.msra.mxu0 %v99
  %298 = vmatprep.mubr.f32.mxu0 %v31
  %299 = vmatmul.mubr.f32.gmra.mrb[0].mxu0 %v30
  %v300 = vpop.f32.mrb[0].mxu0
  %v301 = vadd.f32 %v231, %v300
  %v302 = vpop.f32.mrb[0].mxu0
  %303 = vdwg.mxu0
  %304 = vmatprep.subr.mxu0 0.0
  %305 = vmatpush1.msra.mxu0 %v100
  %306 = vmatprep.subr.mxu0 0.0
  %307 = vmatpush1.msra.mxu0 %v101
  %308 = vmatprep.subr.mxu0 0.0
  %309 = vmatpush1.msra.mxu0 %v102
  %310 = vmatprep.subr.mxu0 0.0
  %311 = vmatpush1.msra.mxu0 %v103
  %312 = vmatprep.subr.mxu0 0.0
  %313 = vmatpush1.msra.mxu0 %v104
  %314 = vmatprep.subr.mxu0 0.0
  %315 = vmatpush1.msra.mxu0 %v105
  %316 = vmatprep.subr.mxu0 0.0
  %317 = vmatpush1.msra.mxu0 %v106
  %318 = vmatprep.subr.mxu0 0.0
  %319 = vmatpush1.msra.mxu0 %v107
  %320 = vmatprep.subr.mxu0 0.0
  %321 = vmatpush1.msra.mxu0 %v108
  %322 = vmatprep.subr.mxu0 0.0
  %323 = vmatpush1.msra.mxu0 %v109
  %324 = vmatprep.subr.mxu0 0.0
  %325 = vmatpush1.msra.mxu0 %v110
  %326 = vmatprep.subr.mxu0 0.0
  %327 = vmatpush1.msra.mxu0 %v111
  %328 = vmatprep.subr.mxu0 0.0
  %329 = vmatpush1.msra.mxu0 %v112
  %330 = vmatprep.subr.mxu0 0.0
  %331 = vmatpush1.msra.mxu0 %v113
  %332 = vmatprep.subr.mxu0 0.0
  %333 = vmatpush1.msra.mxu0 %v114
  %334 = vmatprep.subr.mxu0 0.0
  %335 = vmatpush1.msra.mxu0 %v115
  %336 = vmatprep.subr.mxu0 0.0
  %337 = vmatpush1.msra.mxu0 %v116
  %338 = vmatprep.subr.mxu0 0.0
  %339 = vmatpush1.msra.mxu0 %v117
  %340 = vmatprep.subr.mxu0 0.0
  %341 = vmatpush1.msra.mxu0 %v118
  %342 = vmatprep.subr.mxu0 0.0
  %343 = vmatpush1.msra.mxu0 %v119
  %344 = vmatprep.subr.mxu0 0.0
  %345 = vmatpush1.msra.mxu0 %v120
  %346 = vmatprep.subr.mxu0 0.0
  %347 = vmatpush1.msra.mxu0 %v121
  %348 = vmatprep.subr.mxu0 0.0
  %349 = vmatpush1.msra.mxu0 %v122
  %350 = vmatprep.subr.mxu0 0.0
  %351 = vmatpush1.msra.mxu0 %v123
  %352 = vmatprep.subr.mxu0 0.0
  %353 = vmatpush1.msra.mxu0 %v124
  %354 = vmatprep.subr.mxu0 0.0
  %355 = vmatpush1.msra.mxu0 %v125
  %356 = vmatprep.subr.mxu0 0.0
  %357 = vmatpush1.msra.mxu0 %v126
  %358 = vmatprep.subr.mxu0 0.0
  %359 = vmatpush1.msra.mxu0 %v127
  %360 = vmatprep.subr.mxu0 0.0
  %361 = vmatpush1.msra.mxu0 %v128
  %362 = vmatprep.subr.mxu0 0.0
  %363 = vmatpush1.msra.mxu0 %v129
  %364 = vmatprep.subr.mxu0 0.0
  %365 = vmatpush1.msra.mxu0 %v130
  %366 = vmatprep.subr.mxu0 0.0
  %367 = vmatpush1.msra.mxu0 %v131
  %368 = vmatprep.mubr.f32.mxu0 %v33
  %369 = vmatmul.mubr.f32.gmra.mrb[0].mxu0 %v32
  %v370 = vpop.f32.mrb[0].mxu0
  %v371 = vadd.f32 %v301, %v370
  %v372 = vpop.f32.mrb[0].mxu0
  %373 = vdwg.mxu0
  %374 = vmatprep.subr.mxu0 0.0
  %375 = vmatpush1.msra.mxu0 %v132
  %376 = vmatprep.subr.mxu0 0.0
  %377 = vmatpush1.msra.mxu0 %v133
  %378 = vmatprep.subr.mxu0 0.0
  %379 = vmatpush1.msra.mxu0 %v134
  %380 = vmatprep.subr.mxu0 0.0
  %381 = vmatpush1.msra.mxu0 %v135
  %382 = vmatprep.subr.mxu0 0.0
  %383 = vmatpush1.msra.mxu0 %v136
  %384 = vmatprep.subr.mxu0 0.0
  %385 = vmatpush1.msra.mxu0 %v137
  %386 = vmatprep.subr.mxu0 0.0
  %387 = vmatpush1.msra.mxu0 %v138
  %388 = vmatprep.subr.mxu0 0.0
  %389 = vmatpush1.msra.mxu0 %v139
  %390 = vmatprep.subr.mxu0 0.0
  %391 = vmatpush1.msra.mxu0 %v140
  %392 = vmatprep.subr.mxu0 0.0
  %393 = vmatpush1.msra.mxu0 %v141
  %394 = vmatprep.subr.mxu0 0.0
  %395 = vmatpush1.msra.mxu0 %v142
  %396 = vmatprep.subr.mxu0 0.0
  %397 = vmatpush1.msra.mxu0 %v143
  %398 = vmatprep.subr.mxu0 0.0
  %399 = vmatpush1.msra.mxu0 %v144
  %400 = vmatprep.subr.mxu0 0.0
  %401 = vmatpush1.msra.mxu0 %v145
  %402 = vmatprep.subr.mxu0 0.0
  %403 = vmatpush1.msra.mxu0 %v146
  %404 = vmatprep.subr.mxu0 0.0
  %405 = vmatpush1.msra.mxu0 %v147
  %406 = vmatprep.subr.mxu0 0.0
  %407 = vmatpush1.msra.mxu0 %v148
  %408 = vmatprep.subr.mxu0 0.0
  %409 = vmatpush1.msra.mxu0 %v149
  %410 = vmatprep.subr.mxu0 0.0
  %411 = vmatpush1.msra.mxu0 %v150
  %412 = vmatprep.subr.mxu0 0.0
  %413 = vmatpush1.msra.mxu0 %v151
  %414 = vmatprep.subr.mxu0 0.0
  %415 = vmatpush1.msra.mxu0 %v152
  %416 = vmatprep.subr.mxu0 0.0
  %417 = vmatpush1.msra.mxu0 %v153
  %418 = vmatprep.subr.mxu0 0.0
  %419 = vmatpush1.msra.mxu0 %v154
  %420 = vmatprep.subr.mxu0 0.0
  %421 = vmatpush1.msra.mxu0 %v155
  %422 = vmatprep.subr.mxu0 0.0
  %423 = vmatpush1.msra.mxu0 %v156
  %424 = vmatprep.subr.mxu0 0.0
  %425 = vmatpush1.msra.mxu0 %v157
  %426 = vmatprep.subr.mxu0 0.0
  %427 = vmatpush1.msra.mxu0 %v158
  %428 = vmatprep.subr.mxu0 0.0
  %429 = vmatpush1.msra.mxu0 %v159
  %430 = vmatprep.subr.mxu0 0.0
  %431 = vmatpush1.msra.mxu0 %v160
  %432 = vmatprep.subr.mxu0 0.0
  %433 = vmatpush1.msra.mxu0 %v161
  %434 = vmatprep.subr.mxu0 0.0
  %435 = vmatpush1.msra.mxu0 %v162
  %436 = vmatprep.subr.mxu0 0.0
  %437 = vmatpush1.msra.mxu0 %v163
  %438 = vmatprep.mubr.f32.mxu0 %v35
  %439 = vmatmul.mubr.f32.gmra.mrb[0].mxu0 %v34
  %v440 = vpop.f32.mrb[0].mxu0
  %v441 = vadd.f32 %v371, %v440
  %v442 = vpop.f32.mrb[0].mxu0
  %443 = vdwg.mxu0
  %v444 = vadd.f32 %v27, %v441
  %vm445 = vcmask 261120
  %446 = vst.msk [vmem:[%s3] sm:$0xff] %vm445, %v444
  // Predicated region
  $region18: #{de_forward.1} parent=0 // pred_check
    _
  $region19: #{de_forward.1} parent=0 // pred_check_branch
    %448 = sbr.rel (0) target = $region21
  $region20: #{de_forward.1} parent=0 // pred_region
    _
  $region21: #{de_forward.1} parent=0 // pred_fallthru
    _
  // Predicated region
  $region22: #{de_forward.1} parent=0 // pred_check
    _
  $region23: #{de_forward.1} parent=0 // pred_check_branch
    %450 = sbr.rel (0) target = $region25
  $region24: #{de_forward.1} parent=0 // pred_region
    _
  $region25: #{de_forward.1} parent=0 // pred_fallthru
    _

</llo_original>
